<compile_context>
chip_gen: v5e
topology: v5e:2x2
jax: 0.10.0
libtpu: 0.0.40
codegen_flags: <defaults>
</compile_context>

<pallas_src>
import functools

import jax
import jax.numpy as jnp
from jax.experimental import pallas as pl
from jax.experimental.pallas import tpu as pltpu


def _round_up(x, m):
    return ((x + m - 1) // m) * m


def highway_fused_kernel(x_ref, w_ref, b_ref, o_ref, *, num_layers, dp, unroll):
    """Apply all highway layers to one (TILE_N, Dp) row tile.

    Per layer l:
        proj = x @ W_l + b_l        # (TILE_N, 2*Dp), bf16 operands, f32 MXU accumulation
        h    = relu(proj[:, :Dp])
        g    = sigmoid(proj[:, Dp:])
        x    = h + g * (x - h)      # == g*x + (1-g)*h
    """
    w_dtype = w_ref.dtype
    cur0 = x_ref[...].astype(jnp.float32)

    def layer(l, cur):
        proj = jnp.dot(cur.astype(w_dtype), w_ref[l],
                       preferred_element_type=jnp.float32)
        proj = proj + b_ref[l].astype(jnp.float32)
        h = jnp.maximum(proj[:, :dp], 0.0)       # relu         (VPU)
        g = jax.nn.sigmoid(proj[:, dp:])         # gate sigmoid (EUP)
        # TODO(synk): if profiling shows the EUP slot binding at Dp=128 on
        # v6e/v7x, compute the sigmoid on bf16 inputs (not valid on v5e).
        return h + g * (cur - h)                 # highway combine, f32

    # fori_loop bounds live ranges to a single layer's intermediates (a static
    # Python loop would keep L copies of the f32 proj alive); unroll=True keeps
    # LLO scheduler visibility for small L.
    cur = jax.lax.fori_loop(0, num_layers, layer, cur0, unroll=unroll)
    o_ref[...] = cur.astype(o_ref.dtype)


def _vmem_budget_bytes():
    """Physical VMEM minus 16 MiB headroom: ~48 MiB on v7x, ~112 MiB on v5e/v6e."""
    phys = 64 * 1024 * 1024  # conservative (v7x-sized) fallback
    try:
        phys = int(pltpu.get_tpu_info().vmem_capacity_bytes)
    except Exception:
        pass
    return max(phys - 16 * 1024 * 1024, 16 * 1024 * 1024)


def highway_forward(x, w_cat, b_cat, *, input_dim, tile_n=None):
    """x: (..., D).  w_cat: (L, Dp, 2*Dp) padded, pre-transposed, bf16.  b_cat: (L, 1, 2*Dp) f32."""
    orig_shape = x.shape
    D = input_dim
    L, Dp, Dp2 = w_cat.shape
    assert Dp2 == 2 * Dp

    x2d = x.reshape(-1, D)
    N = x2d.shape[0]

    x_item = jnp.dtype(x.dtype).itemsize
    w_item = jnp.dtype(w_cat.dtype).itemsize
    b_item = jnp.dtype(b_cat.dtype).itemsize

    # Row alignment: (16,128) native tile for sub-32-bit activations, (8,128) for f32.
    align = 16 if x_item < 4 else 8

    # Default row tile: small Dp => larger tiles to amortize per-grid-step overhead
    # and HBM streaming; large Dp => smaller so f32 intermediates fit comfortably.
    if tile_n is None:
        tile_n = 2048 if Dp <= 128 else (1024 if Dp <= 256 else 512)
    tn = _round_up(tile_n, align)

    n_rows = _round_up(max(N, 1), align)
    if n_rows > 128:
        # Enough work: keep >= 2 grid steps so both v7x TensorCores get a tile.
        tn = min(tn, _round_up(pl.cdiv(n_rows, 2), align))
    else:
        tn = min(tn, n_rows)

    w_bytes = L * Dp * 2 * Dp * w_item          # single-buffered (pl.Buffered(1))
    b_bytes = L * 1 * 2 * Dp * b_item           # single-buffered (pl.Buffered(1))

    def vmem_needed(t):
        io_bytes = 2 * 2 * t * Dp * x_item      # double-buffered x and out tiles
        # In-kernel intermediates for one live layer: proj (t,2Dp) f32, cur/h/g
        # (t,Dp) f32 each, plus the bf16 cast of cur fed to the MXU.
        scratch = t * Dp * (2 * 4 + 3 * 4 + 2)
        return io_bytes + w_bytes + b_bytes + scratch + (2 << 20)

    cap = _vmem_budget_bytes()
    while vmem_needed(tn) > cap and tn > align:
        tn = max(align, _round_up(tn // 2, align))

    n_pad = _round_up(max(N, 1), tn)

    # Zero-pad rows and lanes (padded weight rows/cols and bias lanes are zero, so
    # padded lanes stay exactly zero through every layer: h=0, g=0.5, delta=0).
    xp = jnp.zeros((n_pad, Dp), x.dtype).at[:N, :D].set(x2d)

    grid = (n_pad // tn,)
    vmem_limit = int(min(max(vmem_needed(tn), 16 * 1024 * 1024), cap))

    flops = 2 * L * n_pad * Dp * (2 * Dp)
    transcendentals = L * n_pad * Dp
    bytes_accessed = (2 * xp.size * x_item
                      + w_cat.size * w_item
                      + b_cat.size * b_item)

    kernel = functools.partial(highway_fused_kernel, num_layers=L, dp=Dp,
                               unroll=(L <= 4))

    out = pl.pallas_call(
        kernel,
        out_shape=jax.ShapeDtypeStruct((n_pad, Dp), x.dtype),
        grid_spec=pl.GridSpec(
            grid=grid,
            in_specs=[
                # Activation tile: streamed, default double-buffering.
                pl.BlockSpec((tn, Dp), lambda i: (i, 0)),
                # Weights / biases: constant index_map (fetched once, VMEM-resident),
                # single-buffered so they do not pay a 2x VMEM footprint.
                pl.BlockSpec((L, Dp, 2 * Dp), lambda i: (0, 0, 0),
                             pipeline_mode=pl.Buffered(1)),
                pl.BlockSpec((L, 1, 2 * Dp), lambda i: (0, 0, 0),
                             pipeline_mode=pl.Buffered(1)),
            ],
            out_specs=pl.BlockSpec((tn, Dp), lambda i: (i, 0)),
        ),
        compiler_params=pltpu.CompilerParams(
            dimension_semantics=("parallel",),
            vmem_limit_bytes=vmem_limit),
        cost_estimate=pl.CostEstimate(
            flops=flops,
            transcendentals=transcendentals,
            bytes_accessed=bytes_accessed),
    )(xp, w_cat, b_cat)

    return out[:N, :D].reshape(orig_shape)


def init_highway_params(key, input_dim, num_layers, dtype=jnp.bfloat16):
    """Mirror nn.Linear(input_dim, 2*input_dim) defaults + bias[D:] = 1.

    Returns:
      w_cat: (L, Dp, 2*Dp)  zero-padded, pre-transposed, stored in `dtype` (bf16)
      b_cat: (L, 1, 2*Dp)   zero-padded, f32
      raw:   list of (wt (D, 2D) bf16-roundtripped f32, b (2D,) f32) for the reference
    """
    D = input_dim
    Dp = _round_up(D, 128)
    bound = 1.0 / (D ** 0.5)
    w_list, b_list, raw = [], [], []
    for l in range(num_layers):
        kw, kb = jax.random.split(jax.random.fold_in(key, l))
        # PyTorch Linear: weight (2D, D), bias (2D,); y = x @ W.T + b
        w = jax.random.uniform(kw, (2 * D, D), jnp.float32, -bound, bound)
        b = jax.random.uniform(kb, (2 * D,), jnp.float32, -bound, bound)
        b = b.at[D:].set(1.0)  # gate bias filled with 1, as in Highway.__init__
        wt = w.T  # (D, 2D): [:, :D] nonlinear part, [:, D:] gate part
        wp = jnp.zeros((Dp, 2 * Dp), jnp.float32)
        wp = wp.at[:D, :D].set(wt[:, :D])
        wp = wp.at[:D, Dp:Dp + D].set(wt[:, D:])
        bp = jnp.zeros((1, 2 * Dp), jnp.float32)
        bp = bp.at[0, :D].set(b[:D])
        bp = bp.at[0, Dp:Dp + D].set(b[D:])
        w_list.append(wp)
        b_list.append(bp)
        # Reference uses the same bf16-quantized weights the kernel sees.
        wt_q = wt.astype(dtype).astype(jnp.float32)
        raw.append((wt_q, b))
    w_cat = jnp.stack(w_list).astype(dtype)        # (L, Dp, 2Dp) bf16
    b_cat = jnp.stack(b_list).astype(jnp.float32)  # biases kept f32
    return w_cat, b_cat, raw


def highway_reference(x, raw_params):
    """Pure-JAX reference matching the PyTorch forward (with the kernel's bf16
    operand quantization applied, so the comparison isolates kernel bugs)."""
    cur = x
    D = x.shape[-1]
    for (wt_q, b) in raw_params:
        cur_q = cur.astype(jnp.bfloat16).astype(jnp.float32)
        proj = cur_q @ wt_q + b
        h = jnp.maximum(proj[..., :D], 0.0)
        g = jax.nn.sigmoid(proj[..., D:])
        cur = g * cur + (1.0 - g) * h
    return cur


if __name__ == "__main__":
    key = jax.random.PRNGKey(0)
    k_x, k_p = jax.random.split(key)

    batch, seq, input_dim = 2, 8, 32
    num_layers = 2

    x = jax.random.normal(k_x, (batch, seq, input_dim), jnp.float32)
    w_cat, b_cat, raw_params = init_highway_params(k_p, input_dim, num_layers)

    out = highway_forward(x, w_cat, b_cat, input_dim=input_dim)
    out = jax.block_until_ready(out)

    ref = highway_reference(x, raw_params)
    assert out.shape == x.shape
    max_err = float(jnp.max(jnp.abs(out - ref)))
    assert jnp.allclose(out, ref, atol=2e-3, rtol=2e-3), (
        f"mismatch vs reference (max abs err {max_err})")

    print("KERNEL_OK")
</pallas_src>

<mosaic_0001>
module attributes {stable_mosaic.version = 11 : i64} {
  func.func @highway_fused_kernel(%arg0: i32, %arg1: memref<16x128xf32, #tpu.memory_space<vmem>>, %arg2: memref<2x128x256xbf16, #tpu.memory_space<vmem>>, %arg3: memref<2x1x256xf32, #tpu.memory_space<vmem>>, %arg4: memref<16x128xf32, #tpu.memory_space<vmem>>) attributes {dimension_semantics = [#tpu.dimension_semantics<parallel>], iteration_bounds = array<i64: 1>, scalar_prefetch = 0 : i64, scratch_operands = 0 : i64, tpu.core_type = #tpu.core_type<tc>, window_params = [{transform_indices = @transform_0, window_bounds = array<i64: 16, 128>}, {pipeline_mode = #tpu.pipeline_mode<synchronous>, transform_indices = @transform_1, window_bounds = array<i64: 2, 128, 256>}, {pipeline_mode = #tpu.pipeline_mode<synchronous>, transform_indices = @transform_2, window_bounds = array<i64: 2, 1, 256>}, {transform_indices = @transform_3, window_bounds = array<i64: 16, 128>}]} {
    %c0 = arith.constant 0 : index
    %c0_0 = arith.constant 0 : index
    %0 = vector.load %arg1[%c0, %c0_0] : memref<16x128xf32, #tpu.memory_space<vmem>>, vector<16x128xf32>
    %c0_i32 = arith.constant 0 : i32
    %1 = arith.truncf %0 : vector<16x128xf32> to vector<16x128xbf16>
    %2 = arith.index_cast %c0_i32 : i32 to index
    %c0_1 = arith.constant 0 : index
    %c0_2 = arith.constant 0 : index
    %3 = vector.load %arg2[%2, %c0_1, %c0_2] : memref<2x128x256xbf16, #tpu.memory_space<vmem>>, vector<1x128x256xbf16>
    %4 = vector.shape_cast %3 : vector<1x128x256xbf16> to vector<128x256xbf16>
    %cst = arith.constant dense<0.000000e+00> : vector<16x256xf32>
    %5 = tpu.matmul %1, %4, %cst {dimension_numbers = #tpu.dot_dimension_numbers<[1], [0], [0], [1], [0, 0, 1, 1], [], []>} : vector<16x128xbf16>, vector<128x256xbf16>, vector<16x256xf32> -> vector<16x256xf32>
    %6 = arith.index_cast %c0_i32 : i32 to index
    %c0_3 = arith.constant 0 : index
    %c0_4 = arith.constant 0 : index
    %7 = vector.load %arg3[%6, %c0_3, %c0_4] : memref<2x1x256xf32, #tpu.memory_space<vmem>>, vector<1x1x256xf32>
    %8 = vector.shape_cast %7 : vector<1x1x256xf32> to vector<1x256xf32>
    %9 = vector.broadcast %8 : vector<1x256xf32> to vector<16x256xf32>
    %10 = arith.addf %5, %9 : vector<16x256xf32>
    %11 = vector.extract_strided_slice %10 {offsets = [0, 0], sizes = [16, 128], strides = [1, 1]} : vector<16x256xf32> to vector<16x128xf32>
    %cst_5 = arith.constant 0.000000e+00 : f32
    %12 = vector.broadcast %cst_5 : f32 to vector<16x128xf32>
    %13 = arith.maximumf %11, %12 : vector<16x128xf32>
    %14 = vector.extract_strided_slice %10 {offsets = [0, 128], sizes = [16, 128], strides = [1, 1]} : vector<16x256xf32> to vector<16x128xf32>
    %15 = arith.negf %14 : vector<16x128xf32>
    %16 = math.exp %15 : vector<16x128xf32>
    %cst_6 = arith.constant 1.000000e+00 : f32
    %17 = vector.broadcast %cst_6 : f32 to vector<16x128xf32>
    %18 = arith.addf %17, %16 : vector<16x128xf32>
    %19 = arith.divf %17, %18 : vector<16x128xf32>
    %20 = arith.subf %0, %13 : vector<16x128xf32>
    %21 = arith.mulf %19, %20 : vector<16x128xf32>
    %22 = arith.addf %13, %21 : vector<16x128xf32>
    %c1_i32 = arith.constant 1 : i32
    %23 = arith.truncf %22 : vector<16x128xf32> to vector<16x128xbf16>
    %24 = arith.index_cast %c1_i32 : i32 to index
    %c0_7 = arith.constant 0 : index
    %c0_8 = arith.constant 0 : index
    %25 = vector.load %arg2[%24, %c0_7, %c0_8] : memref<2x128x256xbf16, #tpu.memory_space<vmem>>, vector<1x128x256xbf16>
    %26 = vector.shape_cast %25 : vector<1x128x256xbf16> to vector<128x256xbf16>
    %cst_9 = arith.constant dense<0.000000e+00> : vector<16x256xf32>
    %27 = tpu.matmul %23, %26, %cst_9 {dimension_numbers = #tpu.dot_dimension_numbers<[1], [0], [0], [1], [0, 0, 1, 1], [], []>} : vector<16x128xbf16>, vector<128x256xbf16>, vector<16x256xf32> -> vector<16x256xf32>
    %28 = arith.index_cast %c1_i32 : i32 to index
    %c0_10 = arith.constant 0 : index
    %c0_11 = arith.constant 0 : index
    %29 = vector.load %arg3[%28, %c0_10, %c0_11] : memref<2x1x256xf32, #tpu.memory_space<vmem>>, vector<1x1x256xf32>
    %30 = vector.shape_cast %29 : vector<1x1x256xf32> to vector<1x256xf32>
    %31 = vector.broadcast %30 : vector<1x256xf32> to vector<16x256xf32>
    %32 = arith.addf %27, %31 : vector<16x256xf32>
    %33 = vector.extract_strided_slice %32 {offsets = [0, 0], sizes = [16, 128], strides = [1, 1]} : vector<16x256xf32> to vector<16x128xf32>
    %cst_12 = arith.constant 0.000000e+00 : f32
    %34 = vector.broadcast %cst_12 : f32 to vector<16x128xf32>
    %35 = arith.maximumf %33, %34 : vector<16x128xf32>
    %36 = vector.extract_strided_slice %32 {offsets = [0, 128], sizes = [16, 128], strides = [1, 1]} : vector<16x256xf32> to vector<16x128xf32>
    %37 = arith.negf %36 : vector<16x128xf32>
    %38 = math.exp %37 : vector<16x128xf32>
    %cst_13 = arith.constant 1.000000e+00 : f32
    %39 = vector.broadcast %cst_13 : f32 to vector<16x128xf32>
    %40 = arith.addf %39, %38 : vector<16x128xf32>
    %41 = arith.divf %39, %40 : vector<16x128xf32>
    %42 = arith.subf %22, %35 : vector<16x128xf32>
    %43 = arith.mulf %41, %42 : vector<16x128xf32>
    %44 = arith.addf %35, %43 : vector<16x128xf32>
    %c2_i32 = arith.constant 2 : i32
    %c0_14 = arith.constant 0 : index
    %c0_15 = arith.constant 0 : index
    %45 = vector.load %arg4[%c0_14, %c0_15] : memref<16x128xf32, #tpu.memory_space<vmem>>, vector<16x128xf32>
    tpu.vector_store %arg4[%c0_14, %c0_15], %44 {strides = array<i32>} : memref<16x128xf32, #tpu.memory_space<vmem>>, vector<16x128xf32>,
    return
  }
  func.func @transform_0(%arg0: i32) -> (i32, i32) {
    %c0_i32 = arith.constant 0 : i32
    %c0_i32_0 = arith.constant 0 : i32
    return %arg0, %c0_i32 : i32, i32
  }
  func.func @transform_1(%arg0: i32) -> (i32, i32, i32) {
    %c0_i32 = arith.constant 0 : i32
    %c0_i32_0 = arith.constant 0 : i32
    %c0_i32_1 = arith.constant 0 : i32
    %c0_i32_2 = arith.constant 0 : i32
    return %c0_i32, %c0_i32_0, %c0_i32_1 : i32, i32, i32
  }
  func.func @transform_2(%arg0: i32) -> (i32, i32, i32) {
    %c0_i32 = arith.constant 0 : i32
    %c0_i32_0 = arith.constant 0 : i32
    %c0_i32_1 = arith.constant 0 : i32
    %c0_i32_2 = arith.constant 0 : i32
    return %c0_i32, %c0_i32_0, %c0_i32_1 : i32, i32, i32
  }
  func.func @transform_3(%arg0: i32) -> (i32, i32) {
    %c0_i32 = arith.constant 0 : i32
    %c0_i32_0 = arith.constant 0 : i32
    return %arg0, %c0_i32 : i32, i32
  }
}

</mosaic_0001>

<llo_original>
// kernel: tpu_custom_call.1
$region0: #{tpu_custom_call.1}
  #allocation0 [shape = 'u32[]', space=smem, size = 0x4, offset = 0x4, fixed_abs, tag = 'smem constant byte address 0x4 - core index']
  #allocation1 [shape = 'u32[72,128]{1,0:T(1,128)}', space=vmem, size = 0x9000, scoped, tag = 'internal scratch']
  %s0 = inlined_call_operand.hbm [shape: f32[16,128], index: 0, kind: input, shape index: {}]
  %s1 = inlined_call_operand.hbm [shape: bf16[2,128,256], index: 1, kind: input, shape index: {}]
  %s2 = inlined_call_operand.hbm [shape: f32[2,1,256], index: 2, kind: input, shape index: {}]
  %s3 = inlined_call_operand.hbm [shape: f32[16,128], index: 3, kind: output, shape index: {}]
  %s4 = sld [smem:[#allocation0]]
  $region34: #{tpu_custom_call.1} parent=0
    _
  %s6 = ssub.s32 1, %s4
  %s7 = scalar_select 0, %s6, %s4
  $region1: #{tpu_custom_call.1} parent=0
    #allocation2 [shape = 'u8[8192]{0}', space=vmem, size = 0x2000, scoped, tag = 'input window, operand 0, single buffered']
    #allocation3 [shape = 's32[1]{0}', space=sflag, size = 0x4, scoped, tag = 'scoped memory for tpu_custom_call.1']
    #allocation4 [shape = 's32[1]{0}', space=sflag, size = 0x4, scoped, tag = 'scoped memory for tpu_custom_call.1']
    #allocation5 [shape = 'u8[131072]{0}', space=vmem, size = 0x20000, scoped, tag = 'input window, operand 1, single buffered']
    #allocation6 [shape = 's32[1]{0}', space=sflag, size = 0x4, scoped, tag = 'scoped memory for tpu_custom_call.1']
    #allocation7 [shape = 'u8[2048]{0}', space=vmem, size = 0x800, scoped, tag = 'input window, operand 2, single buffered']
    #allocation8 [shape = 'u8[8192]{0}', space=vmem, size = 0x2000, scoped, tag = 'output window, operand 0, single buffered']
    %8 = vsyncpa [#allocation3], 0
    %9 = vsyncpa [#allocation6], 0
    %10 = vsyncpa [#allocation4], 0
    // Predicated region
    $region2: #{tpu_custom_call.1} parent=1 // pred_check
      _
    $region3: #{tpu_custom_call.1} parent=1 // pred_check_branch
      %12 = sbr.rel (0) target = $region5
    $region4: #{tpu_custom_call.1} parent=1 // pred_region
      %14 = vsyncadd [#allocation3], 0
      %s15 = sshll.u32 %s0, 4
      %s16 = int_to_ptr.hbm [resolvable:$true] %s15
      %s17 = sshll.u32 [#allocation2], 4
      %s18 = int_to_ptr.vmem [resolvable:$true] %s17
      %23 = dma.hbm_to_vmem [thread:$0]  %s16, 256, %s18, [#allocation3], 128, 128, 8
    $region5: #{tpu_custom_call.1} parent=1 // pred_fallthru
      _
    // Predicated region
    $region6: #{tpu_custom_call.1} parent=1 // pred_check
      _
    $region7: #{tpu_custom_call.1} parent=1 // pred_check_branch
      %25 = sbr.rel (0) target = $region9
    $region8: #{tpu_custom_call.1} parent=1 // pred_region
      %27 = vsyncadd [#allocation6], 0
      %s28 = sshll.u32 %s1, 4
      %s29 = int_to_ptr.hbm [resolvable:$true] %s28
      %s30 = sshll.u32 [#allocation5], 4
      %s31 = int_to_ptr.vmem [resolvable:$true] %s30
      %36 = dma.hbm_to_vmem [thread:$0]  %s29, 4096, %s31, [#allocation6], 128, 128, 8
    $region9: #{tpu_custom_call.1} parent=1 // pred_fallthru
      _
    // Predicated region
    $region10: #{tpu_custom_call.1} parent=1 // pred_check
      _
    $region11: #{tpu_custom_call.1} parent=1 // pred_check_branch
      %38 = sbr.rel (0) target = $region13
    $region12: #{tpu_custom_call.1} parent=1 // pred_region
      %40 = vsyncadd [#allocation6], 0
      %s41 = sshll.u32 %s2, 4
      %s42 = int_to_ptr.hbm [resolvable:$true] %s41
      %s43 = sshll.u32 [#allocation7], 4
      %s44 = int_to_ptr.vmem [resolvable:$true] %s43
      %49 = dma.hbm_to_vmem [thread:$0]  %s42, 64, %s44, [#allocation6], 32, 32, 2
    $region13: #{tpu_custom_call.1} parent=1 // pred_fallthru
      _
    // Predicated region
    $region14: #{tpu_custom_call.1} parent=1 // pred_check
      _
    $region15: #{tpu_custom_call.1} parent=1 // pred_check_branch
      %51 = sbr.rel (0) target = $region17
    $region16: #{tpu_custom_call.1} parent=1 // pred_region
      %53 = dma.done [#allocation3], 256
    $region17: #{tpu_custom_call.1} parent=1 // pred_fallthru
      _
    // Predicated region
    $region18: #{tpu_custom_call.1} parent=1 // pred_check
      _
    $region19: #{tpu_custom_call.1} parent=1 // pred_check_branch
      %55 = sbr.rel (0) target = $region21
    $region20: #{tpu_custom_call.1} parent=1 // pred_region
      %57 = dma.done [#allocation6], 4096
    $region21: #{tpu_custom_call.1} parent=1 // pred_fallthru
      _
    // Predicated region
    $region22: #{tpu_custom_call.1} parent=1 // pred_check
      _
    $region23: #{tpu_custom_call.1} parent=1 // pred_check_branch
      %59 = sbr.rel (0) target = $region25
    $region24: #{tpu_custom_call.1} parent=1 // pred_region
      %61 = dma.done [#allocation6], 64
    $region25: #{tpu_custom_call.1} parent=1 // pred_fallthru
      _
    %v62 = vld [vmem:[#allocation2] sm:$0xff]
    %v63 = vld [vmem:[#allocation2 + $0x8] sm:$0xff]
    %v64 = vpack.c.bf16 %v63, %v62
    %v65 = vld [vmem:[#allocation5] sm:$0xff]
    %v66 = vld [vmem:[#allocation5 + $0x8] sm:$0xff]
    %v67 = vld [vmem:[#allocation5 + $0x10] sm:$0xff]
    %v68 = vld [vmem:[#allocation5 + $0x18] sm:$0xff]
    %v69 = vld [vmem:[#allocation5 + $0x20] sm:$0xff]
    %v70 = vld [vmem:[#allocation5 + $0x28] sm:$0xff]
    %v71 = vld [vmem:[#allocation5 + $0x30] sm:$0xff]
    %v72 = vld [vmem:[#allocation5 + $0x38] sm:$0xff]
    %v73 = vld [vmem:[#allocation5 + $0x40] sm:$0xff]
    %v74 = vld [vmem:[#allocation5 + $0x48] sm:$0xff]
    %v75 = vld [vmem:[#allocation5 + $0x50] sm:$0xff]
    %v76 = vld [vmem:[#allocation5 + $0x58] sm:$0xff]
    %v77 = vld [vmem:[#allocation5 + $0x60] sm:$0xff]
    %v78 = vld [vmem:[#allocation5 + $0x68] sm:$0xff]
    %v79 = vld [vmem:[#allocation5 + $0x70] sm:$0xff]
    %v80 = vld [vmem:[#allocation5 + $0x78] sm:$0xff]
    %v81 = vld [vmem:[#allocation7] sm:$0x3]
    %v83 = vperm.slane %v81, 0
    %v84 = vperm.slane %v81, 1
    %v103 = vunpack.c.l.b16 %v65
    %v104 = vunpack.c.h.b16 %v65
    %v105 = vunpack.c.l.b16 %v66
    %v106 = vunpack.c.h.b16 %v66
    %v107 = vunpack.c.l.b16 %v67
    %v108 = vunpack.c.h.b16 %v67
    %v109 = vunpack.c.l.b16 %v68
    %v110 = vunpack.c.h.b16 %v68
    %v111 = vunpack.c.l.b16 %v69
    %v112 = vunpack.c.h.b16 %v69
    %v113 = vunpack.c.l.b16 %v70
    %v114 = vunpack.c.h.b16 %v70
    %v115 = vunpack.c.l.b16 %v71
    %v116 = vunpack.c.h.b16 %v71
    %v117 = vunpack.c.l.b16 %v72
    %v118 = vunpack.c.h.b16 %v72
    %v119 = vunpack.c.l.b16 %v73
    %v120 = vunpack.c.h.b16 %v73
    %v121 = vunpack.c.l.b16 %v74
    %v122 = vunpack.c.h.b16 %v74
    %v123 = vunpack.c.l.b16 %v75
    %v124 = vunpack.c.h.b16 %v75
    %v125 = vunpack.c.l.b16 %v76
    %v126 = vunpack.c.h.b16 %v76
    %v127 = vunpack.c.l.b16 %v77
    %v128 = vunpack.c.h.b16 %v77
    %v129 = vunpack.c.l.b16 %v78
    %v130 = vunpack.c.h.b16 %v78
    %v131 = vunpack.c.l.b16 %v79
    %v132 = vunpack.c.h.b16 %v79
    %v133 = vunpack.c.l.b16 %v80
    %v134 = vunpack.c.h.b16 %v80
    %v135 = vpack.c.b16 %v105, %v103
    %v136 = vpack.c.b16 %v106, %v104
    %v137 = vpack.c.b16 %v109, %v107
    %v138 = vpack.c.b16 %v110, %v108
    %v139 = vpack.c.b16 %v113, %v111
    %v140 = vpack.c.b16 %v114, %v112
    %v141 = vpack.c.b16 %v117, %v115
    %v142 = vpack.c.b16 %v118, %v116
    %v143 = vpack.c.b16 %v121, %v119
    %v144 = vpack.c.b16 %v122, %v120
    %v145 = vpack.c.b16 %v125, %v123
    %v146 = vpack.c.b16 %v126, %v124
    %v147 = vpack.c.b16 %v129, %v127
    %v148 = vpack.c.b16 %v130, %v128
    %v149 = vpack.c.b16 %v133, %v131
    %v150 = vpack.c.b16 %v134, %v132
    %167 = vmatpush.bf16.msra.mxu0 %v149
    %168 = vmatpush.bf16.msra.mxu0 %v147
    %169 = vmatpush.bf16.msra.mxu0 %v145
    %170 = vmatpush.bf16.msra.mxu0 %v143
    %171 = vmatpush.bf16.msra.mxu0 %v141
    %172 = vmatpush.bf16.msra.mxu0 %v139
    %173 = vmatpush.bf16.msra.mxu0 %v137
    %174 = vmatpush.bf16.msra.mxu0 %v135
    %175 = vmatmul.bf16.gmra.mxu0 %v64
    %v176 = vpop.f32.mrf.mxu0
    %v177 = vadd.f32 %v83, %v176
    %v178 = vpop.f32.mrf.mxu0
    %v179 = vadd.f32 %v83, %v178
    %180 = vdwg.mxu0
    %181 = vmatpush.bf16.msra.mxu0 %v150
    %182 = vmatpush.bf16.msra.mxu0 %v148
    %183 = vmatpush.bf16.msra.mxu0 %v146
    %184 = vmatpush.bf16.msra.mxu0 %v144
    %185 = vmatpush.bf16.msra.mxu0 %v142
    %186 = vmatpush.bf16.msra.mxu0 %v140
    %187 = vmatpush.bf16.msra.mxu0 %v138
    %188 = vmatpush.bf16.msra.mxu0 %v136
    %189 = vmatmul.bf16.gmra.mxu0 %v64
    %v190 = vpop.f32.mrf.mxu0
    %v191 = vadd.f32 %v84, %v190
    %v192 = vpop.f32.mrf.mxu0
    %v193 = vadd.f32 %v84, %v192
    %194 = vdwg.mxu0
    %v195 = vmax.f32 %v177, 0.0
    %v196 = vmax.f32 %v179, 0.0
    %v197 = vxor.u32 %v191, 2147483648
    %v198 = vxor.u32 %v193, 2147483648
    %v199 = vmul.f32 %v197, 1.442695
    %v200 = vpow.pop %v199
    %v201 = vmul.f32 %v198, 1.442695
    %v202 = vpow.pop %v201
    %v203 = vadd.f32 %v200, 1.0
    %v204 = vadd.f32 %v202, 1.0
    %v205 = vrcp.pop %v203
    %v206 = vmul.f32 %v203, %v205
    %v207 = vsub.f32 1.0, %v206
    %v208 = vmul.f32 %v205, %v207
    %v209 = vadd.f32 %v205, %v208
    %vm210 = vweird.f32 %v203
    %vm211 = vweird.f32 %v205
    %vm212 = vmor %vm210, %vm211
    %v213 = vsel %vm212, %v205, %v209
    %v214 = vand.u32 2147483647, %v203
    %vm215 = vcmp.eq.f32.partialorder %v214, 8.507059e+37
    %v216 = vand.u32 %v203, 2147483648
    %v217 = vor.u32 1.1754944e-38, %v216
    %v218 = vsel %vm215, %v217, %v213
    %v219 = vmul.f32 1.0, %v218
    %v220 = vrcp.pop %v204
    %v221 = vmul.f32 %v204, %v220
    %v222 = vsub.f32 1.0, %v221
    %v223 = vmul.f32 %v220, %v222
    %v224 = vadd.f32 %v220, %v223
    %vm225 = vweird.f32 %v204
    %vm226 = vweird.f32 %v220
    %vm227 = vmor %vm225, %vm226
    %v228 = vsel %vm227, %v220, %v224
    %v229 = vand.u32 2147483647, %v204
    %vm230 = vcmp.eq.f32.partialorder %v229, 8.507059e+37
    %v231 = vand.u32 %v204, 2147483648
    %v232 = vor.u32 1.1754944e-38, %v231
    %v233 = vsel %vm230, %v232, %v228
    %v234 = vmul.f32 1.0, %v233
    %v235 = vsub.f32 %v62, %v195
    %v236 = vsub.f32 %v63, %v196
    %v237 = vmul.f32 %v219, %v235
    %v238 = vmul.f32 %v234, %v236
    %v239 = vadd.f32 %v195, %v237
    %v240 = vadd.f32 %v196, %v238
    %v241 = vpack.c.bf16 %v240, %v239
    %s242 = scalar_lea.vmem [#allocation5], 128
    %v243 = vld [vmem:[%s242] sm:$0xff]
    %v244 = vld [vmem:[%s242 + $0x8] sm:$0xff]
    %v245 = vld [vmem:[%s242 + $0x10] sm:$0xff]
    %v246 = vld [vmem:[%s242 + $0x18] sm:$0xff]
    %v247 = vld [vmem:[%s242 + $0x20] sm:$0xff]
    %v248 = vld [vmem:[%s242 + $0x28] sm:$0xff]
    %v249 = vld [vmem:[%s242 + $0x30] sm:$0xff]
    %v250 = vld [vmem:[%s242 + $0x38] sm:$0xff]
    %v251 = vld [vmem:[%s242 + $0x40] sm:$0xff]
    %v252 = vld [vmem:[%s242 + $0x48] sm:$0xff]
    %v253 = vld [vmem:[%s242 + $0x50] sm:$0xff]
    %v254 = vld [vmem:[%s242 + $0x58] sm:$0xff]
    %v255 = vld [vmem:[%s242 + $0x60] sm:$0xff]
    %v256 = vld [vmem:[%s242 + $0x68] sm:$0xff]
    %v257 = vld [vmem:[%s242 + $0x70] sm:$0xff]
    %v258 = vld [vmem:[%s242 + $0x78] sm:$0xff]
    %s259 = scalar_lea.vmem [#allocation7], 2
    %v260 = vld [vmem:[%s259] sm:$0x3]
    %v262 = vperm.slane %v260, 0
    %v263 = vperm.slane %v260, 1
    %v282 = vunpack.c.l.b16 %v243
    %v283 = vunpack.c.h.b16 %v243
    %v284 = vunpack.c.l.b16 %v244
    %v285 = vunpack.c.h.b16 %v244
    %v286 = vunpack.c.l.b16 %v245
    %v287 = vunpack.c.h.b16 %v245
    %v288 = vunpack.c.l.b16 %v246
    %v289 = vunpack.c.h.b16 %v246
    %v290 = vunpack.c.l.b16 %v247
    %v291 = vunpack.c.h.b16 %v247
    %v292 = vunpack.c.l.b16 %v248
    %v293 = vunpack.c.h.b16 %v248
    %v294 = vunpack.c.l.b16 %v249
    %v295 = vunpack.c.h.b16 %v249
    %v296 = vunpack.c.l.b16 %v250
    %v297 = vunpack.c.h.b16 %v250
    %v298 = vunpack.c.l.b16 %v251
    %v299 = vunpack.c.h.b16 %v251
    %v300 = vunpack.c.l.b16 %v252
    %v301 = vunpack.c.h.b16 %v252
    %v302 = vunpack.c.l.b16 %v253
    %v303 = vunpack.c.h.b16 %v253
    %v304 = vunpack.c.l.b16 %v254
    %v305 = vunpack.c.h.b16 %v254
    %v306 = vunpack.c.l.b16 %v255
    %v307 = vunpack.c.h.b16 %v255
    %v308 = vunpack.c.l.b16 %v256
    %v309 = vunpack.c.h.b16 %v256
    %v310 = vunpack.c.l.b16 %v257
    %v311 = vunpack.c.h.b16 %v257
    %v312 = vunpack.c.l.b16 %v258
    %v313 = vunpack.c.h.b16 %v258
    %v314 = vpack.c.b16 %v284, %v282
    %v315 = vpack.c.b16 %v285, %v283
    %v316 = vpack.c.b16 %v288, %v286
    %v317 = vpack.c.b16 %v289, %v287
    %v318 = vpack.c.b16 %v292, %v290
    %v319 = vpack.c.b16 %v293, %v291
    %v320 = vpack.c.b16 %v296, %v294
    %v321 = vpack.c.b16 %v297, %v295
    %v322 = vpack.c.b16 %v300, %v298
    %v323 = vpack.c.b16 %v301, %v299
    %v324 = vpack.c.b16 %v304, %v302
    %v325 = vpack.c.b16 %v305, %v303
    %v326 = vpack.c.b16 %v308, %v306
    %v327 = vpack.c.b16 %v309, %v307
    %v328 = vpack.c.b16 %v312, %v310
    %v329 = vpack.c.b16 %v313, %v311
    %346 = vmatpush.bf16.msra.mxu0 %v328
    %347 = vmatpush.bf16.msra.mxu0 %v326
    %348 = vmatpush.bf16.msra.mxu0 %v324
    %349 = vmatpush.bf16.msra.mxu0 %v322
    %350 = vmatpush.bf16.msra.mxu0 %v320
    %351 = vmatpush.bf16.msra.mxu0 %v318
    %352 = vmatpush.bf16.msra.mxu0 %v316
    %353 = vmatpush.bf16.msra.mxu0 %v314
    %354 = vmatmul.bf16.gmra.mxu0 %v241
    %v355 = vpop.f32.mrf.mxu0
    %v356 = vadd.f32 %v262, %v355
    %v357 = vpop.f32.mrf.mxu0
    %v358 = vadd.f32 %v262, %v357
    %359 = vdwg.mxu0
    %360 = vmatpush.bf16.msra.mxu0 %v329
    %361 = vmatpush.bf16.msra.mxu0 %v327
    %362 = vmatpush.bf16.msra.mxu0 %v325
    %363 = vmatpush.bf16.msra.mxu0 %v323
    %364 = vmatpush.bf16.msra.mxu0 %v321
    %365 = vmatpush.bf16.msra.mxu0 %v319
    %366 = vmatpush.bf16.msra.mxu0 %v317
    %367 = vmatpush.bf16.msra.mxu0 %v315
    %368 = vmatmul.bf16.gmra.mxu0 %v241
    %v369 = vpop.f32.mrf.mxu0
    %v370 = vadd.f32 %v263, %v369
    %v371 = vpop.f32.mrf.mxu0
    %v372 = vadd.f32 %v263, %v371
    %373 = vdwg.mxu0
    %v374 = vmax.f32 %v356, 0.0
    %v375 = vmax.f32 %v358, 0.0
    %v376 = vxor.u32 %v370, 2147483648
    %v377 = vxor.u32 %v372, 2147483648
    %v378 = vmul.f32 %v376, 1.442695
    %v379 = vpow.pop %v378
    %v380 = vmul.f32 %v377, 1.442695
    %v381 = vpow.pop %v380
    %v382 = vadd.f32 %v379, 1.0
    %v383 = vadd.f32 %v381, 1.0
    %v384 = vrcp.pop %v382
    %v385 = vmul.f32 %v382, %v384
    %v386 = vsub.f32 1.0, %v385
    %v387 = vmul.f32 %v384, %v386
    %v388 = vadd.f32 %v384, %v387
    %vm389 = vweird.f32 %v382
    %vm390 = vweird.f32 %v384
    %vm391 = vmor %vm389, %vm390
    %v392 = vsel %vm391, %v384, %v388
    %v393 = vand.u32 2147483647, %v382
    %vm394 = vcmp.eq.f32.partialorder %v393, 8.507059e+37
    %v395 = vand.u32 %v382, 2147483648
    %v396 = vor.u32 1.1754944e-38, %v395
    %v397 = vsel %vm394, %v396, %v392
    %v398 = vmul.f32 1.0, %v397
    %v399 = vrcp.pop %v383
    %v400 = vmul.f32 %v383, %v399
    %v401 = vsub.f32 1.0, %v400
    %v402 = vmul.f32 %v399, %v401
    %v403 = vadd.f32 %v399, %v402
    %vm404 = vweird.f32 %v383
    %vm405 = vweird.f32 %v399
    %vm406 = vmor %vm404, %vm405
    %v407 = vsel %vm406, %v399, %v403
    %v408 = vand.u32 2147483647, %v383
    %vm409 = vcmp.eq.f32.partialorder %v408, 8.507059e+37
    %v410 = vand.u32 %v383, 2147483648
    %v411 = vor.u32 1.1754944e-38, %v410
    %v412 = vsel %vm409, %v411, %v407
    %v413 = vmul.f32 1.0, %v412
    %v414 = vsub.f32 %v239, %v374
    %v415 = vsub.f32 %v240, %v375
    %v416 = vmul.f32 %v398, %v414
    %v417 = vmul.f32 %v413, %v415
    %v418 = vadd.f32 %v374, %v416
    %v419 = vadd.f32 %v375, %v417
    %420 = vst [vmem:[#allocation8] sm:$0xff] %v418
    %421 = vst [vmem:[#allocation8 + $0x8] sm:$0xff] %v419
    // Predicated region
    $region26: #{tpu_custom_call.1} parent=1 // pred_check
      _
    $region27: #{tpu_custom_call.1} parent=1 // pred_check_branch
      %423 = sbr.rel (0) target = $region29
    $region28: #{tpu_custom_call.1} parent=1 // pred_region
      %425 = vsyncadd [#allocation4], 0
      %s426 = sshll.u32 [#allocation8], 4
      %s427 = int_to_ptr.vmem [resolvable:$true] %s426
      %s428 = sshll.u32 %s3, 4
      %s429 = int_to_ptr.hbm [resolvable:$true] %s428
      %434 = dma.vmem_to_hbm [thread:$0]  %s427, 256, %s429, [#allocation4], 128, 128, 8
    $region29: #{tpu_custom_call.1} parent=1 // pred_fallthru
      _
    // Predicated region
    $region30: #{tpu_custom_call.1} parent=1 // pred_check
      _
    $region31: #{tpu_custom_call.1} parent=1 // pred_check_branch
      %436 = sbr.rel (0) target = $region33
    $region32: #{tpu_custom_call.1} parent=1 // pred_region
      %438 = dma.done [#allocation4], 256
    $region33: #{tpu_custom_call.1} parent=1 // pred_fallthru
      _
    %439 = vsyncpa [#allocation3], 1
    %440 = vsyncpa [#allocation6], 1
    %441 = vsyncpa [#allocation4], 1

</llo_original>
